<compile_context>
chip_gen: v7x
topology: tpu7x:2x2x1
jax: 0.10.0
libtpu: 0.0.40
codegen_flags: <defaults>
</compile_context>

<pallas_src>
import functools

import jax
import jax.numpy as jnp
from jax.experimental import pallas as pl
from jax.experimental.pallas import tpu as pltpu


def _mlp_kernel(xt_ref, w1_ref, b1_ref, w2_ref, b2_ref, w3_ref, b3_ref, ot_ref):
    """Fused 3-layer MLP on one batch tile, transposed layout.

    xt_ref : (input_dim,  bn)   x^T tile  -- batch on the lane axis
    wK_ref : (out_feat, in_feat) compute dtype (torch nn.Linear layout)
    bK_ref : (out_feat, 1) f32
    ot_ref : (output_dim, bn)   y^T tile  -- lane-dense, unmasked stores
    """
    cdt = w1_ref.dtype

    h = jnp.dot(w1_ref[...], xt_ref[...], preferred_element_type=jnp.float32)
    h = jnp.maximum(h + b1_ref[...], 0.0)                       # relu, f32

    h = jnp.dot(w2_ref[...], h.astype(cdt), preferred_element_type=jnp.float32)
    h = jnp.maximum(h + b2_ref[...], 0.0)                       # relu, f32

    y = jnp.dot(w3_ref[...], h.astype(cdt), preferred_element_type=jnp.float32)
    ot_ref[...] = (y + b3_ref[...]).astype(ot_ref.dtype)


def _round_up(x, m):
    return (x + m - 1) // m * m


def _padded_vmem_bytes(rows, cols, dtype):
    """Bytes a (rows, cols) tile of `dtype` actually occupies in VMEM
    (sublane padding: 8 for f32, 16 for bf16, ...; lane padding to 128)."""
    item = jnp.dtype(dtype).itemsize
    sublane = max(8, 32 // item)
    return _round_up(max(rows, 1), sublane) * _round_up(max(cols, 1), 128) * item


@functools.partial(jax.jit, static_argnames=("block_n", "compute_dtype"))
def mlp_forward(x, params, block_n=1024, compute_dtype=jnp.bfloat16):
    """x: [N, input_dim] -> [N, output_dim]."""
    w1, b1, w2, b2, w3, b3 = params
    n, input_dim = x.shape
    hidden_dim = w1.shape[1]
    output_dim = w3.shape[1]
    out_dtype = x.dtype

    # ---- Tiling over the batch axis (the lane axis of the transposed
    # problem): tiles are multiples of 128 lanes; no divisibility constraint
    # on n itself (wrapper pads / slices).  Force >= 2 grid steps when n > 32
    # so v7x's two TensorCores both get work via the "parallel" axis.
    grid_n = pl.cdiv(n, block_n)
    if n > 32:
        grid_n = max(grid_n, 2)
    grid_n = max(grid_n, 1)
    bn = _round_up(pl.cdiv(n, grid_n), 128)
    n_pad = grid_n * bn

    # ---- Layout plumbing in the wrapper (cast once, pad, transpose).
    xc = x.astype(compute_dtype)
    if n_pad != n:
        xc = jnp.pad(xc, ((0, n_pad - n), (0, 0)))
    xt = xc.T                                                  # (input_dim, n_pad)
    w1t, w2t, w3t = (w.T.astype(compute_dtype) for w in (w1, w2, w3))
    b1t, b2t, b3t = (b.T.astype(jnp.float32) for b in (b1, b2, b3))  # (out, 1)

    # ---- VMEM budget from real padded footprints (not nominal bytes).
    c_dt, o_dt = jnp.dtype(compute_dtype), jnp.dtype(out_dtype)
    x_tile = _padded_vmem_bytes(input_dim, bn, c_dt)
    o_tile = _padded_vmem_bytes(output_dim, bn, o_dt)
    weight_bytes = (_padded_vmem_bytes(hidden_dim, input_dim, c_dt)
                    + _padded_vmem_bytes(hidden_dim, hidden_dim, c_dt)
                    + _padded_vmem_bytes(output_dim, hidden_dim, c_dt)
                    + 2 * _padded_vmem_bytes(hidden_dim, 1, jnp.float32)
                    + _padded_vmem_bytes(output_dim, 1, jnp.float32))
    # Compiler-internal scratch: f32 h1/h2, their compute-dtype recasts, f32 y.
    scratch_bytes = (2 * _padded_vmem_bytes(hidden_dim, bn, jnp.float32)
                     + 2 * _padded_vmem_bytes(hidden_dim, bn, c_dt)
                     + _padded_vmem_bytes(output_dim, bn, jnp.float32))
    # x/out tiles double-buffered by the pipeline; constant-index weights are
    # DMA'd once but still allocated double-buffered (see TODO at top).
    vmem_budget = 2 * (x_tile + o_tile) + 2 * weight_bytes + scratch_bytes + (4 << 20)

    # Cap per-generation from the actual hardware (v5e/v6e 128 MiB physical,
    # v7x 64 MiB per TC) instead of a hard-coded 64 MiB clamp.
    try:
        vmem_cap = int(getattr(pltpu.get_tpu_info(), "vmem_capacity_bytes", 64 << 20))
    except Exception:
        vmem_cap = 64 << 20  # safe floor for all current generations
    vmem_limit = int(min(max(vmem_budget, 16 << 20), vmem_cap - (4 << 20)))

    # ---- Advisory cost estimate (real HBM bytes; padded batch).
    flops = 2 * n_pad * (input_dim * hidden_dim
                         + hidden_dim * hidden_dim
                         + hidden_dim * output_dim)
    bytes_accessed = (n_pad * input_dim * c_dt.itemsize
                      + (w1t.size + w2t.size + w3t.size) * c_dt.itemsize
                      + (b1t.size + b2t.size + b3t.size) * 4
                      + n_pad * output_dim * o_dt.itemsize)

    # Weights / biases are resident: constant block index -> fetched once.
    full = lambda shape: pl.BlockSpec(shape, lambda i: (0, 0))

    out_t = pl.pallas_call(
        _mlp_kernel,
        out_shape=jax.ShapeDtypeStruct((output_dim, n_pad), out_dtype),
        grid_spec=pltpu.PrefetchScalarGridSpec(
            num_scalar_prefetch=0,
            grid=(grid_n,),
            in_specs=[
                pl.BlockSpec((input_dim, bn), lambda i: (0, i)),   # x^T tile
                full((hidden_dim, input_dim)),                      # W1^T
                full((hidden_dim, 1)),                              # b1^T
                full((hidden_dim, hidden_dim)),                     # W2^T
                full((hidden_dim, 1)),                              # b2^T
                full((output_dim, hidden_dim)),                     # W3^T
                full((output_dim, 1)),                              # b3^T
            ],
            out_specs=pl.BlockSpec((output_dim, bn), lambda i: (0, i)),
        ),
        compiler_params=pltpu.CompilerParams(
            dimension_semantics=("parallel",),
            vmem_limit_bytes=vmem_limit,
        ),
        cost_estimate=pl.CostEstimate(
            flops=int(flops), transcendentals=0,
            bytes_accessed=int(bytes_accessed)),
    )(xt, w1t, b1t, w2t, b2t, w3t, b3t)

    out = out_t.T                     # (n_pad, output_dim), layout plumbing back
    return out[:n] if n_pad != n else out


def init_mlp_params(key, input_dim, hidden_dim, output_dim, dtype=jnp.float32):
    """Deterministic init mimicking nn.Linear (uniform ±1/sqrt(fan_in))."""
    ks = jax.random.split(key, 6)

    def linear(kw, kb, fan_in, fan_out):
        bound = 1.0 / jnp.sqrt(jnp.asarray(fan_in, dtype=jnp.float32))
        w = jax.random.uniform(kw, (fan_in, fan_out), dtype, -bound, bound)
        b = jax.random.uniform(kb, (1, fan_out), dtype, -bound, bound)
        return w, b

    w1, b1 = linear(ks[0], ks[1], input_dim, hidden_dim)
    w2, b2 = linear(ks[2], ks[3], hidden_dim, hidden_dim)
    w3, b3 = linear(ks[4], ks[5], hidden_dim, output_dim)
    return (w1, b1, w2, b2, w3, b3)


def mlp_reference(x, params):
    w1, b1, w2, b2, w3, b3 = params
    h = jnp.maximum(x @ w1 + b1, 0.0)
    h = jnp.maximum(h @ w2 + b2, 0.0)
    return h @ w3 + b3


if __name__ == "__main__":
    key = jax.random.PRNGKey(0)
    k_x, k_p = jax.random.split(key)

    # Odd batch size on purpose: exercises pad-to-tile, slicing, and (since
    # 37 > 32) the forced 2-step grid for v7x megacore.
    batch, input_dim, hidden_dim, output_dim = 37, 16, 32, 8
    x = jax.random.normal(k_x, (batch, input_dim), dtype=jnp.float32)
    params = init_mlp_params(k_p, input_dim, hidden_dim, output_dim)

    ref = mlp_reference(x, params)

    # Exact f32 compute path.
    out_f32 = jax.block_until_ready(
        mlp_forward(x, params, compute_dtype=jnp.float32))
    assert out_f32.shape == (batch, output_dim)
    assert jnp.allclose(out_f32, ref, atol=1e-5, rtol=1e-5), "f32 mismatch"

    # Default bf16 MXU-input path (f32 accumulation) — looser tolerance.
    out_bf16 = jax.block_until_ready(mlp_forward(x, params))
    assert out_bf16.shape == (batch, output_dim)
    assert jnp.allclose(out_bf16, ref, atol=5e-2, rtol=5e-2), "bf16 mismatch"

    print("KERNEL_OK")
</pallas_src>

<mosaic_0001>
module attributes {stable_mosaic.version = 11 : i64} {
  func.func @_mlp_kernel(%arg0: i32, %arg1: memref<16x128xf32, #tpu.memory_space<vmem>>, %arg2: memref<32x16xf32, #tpu.memory_space<vmem>>, %arg3: memref<32x1xf32, #tpu.memory_space<vmem>>, %arg4: memref<32x32xf32, #tpu.memory_space<vmem>>, %arg5: memref<32x1xf32, #tpu.memory_space<vmem>>, %arg6: memref<8x32xf32, #tpu.memory_space<vmem>>, %arg7: memref<8x1xf32, #tpu.memory_space<vmem>>, %arg8: memref<8x128xf32, #tpu.memory_space<vmem>>) attributes {dimension_semantics = [#tpu.dimension_semantics<parallel>], iteration_bounds = array<i64: 2>, scalar_prefetch = 0 : i64, scratch_operands = 0 : i64, tpu.core_type = #tpu.core_type<tc>, window_params = [{transform_indices = @transform_0, window_bounds = array<i64: 16, 128>}, {pipeline_mode = #tpu.pipeline_mode<synchronous>, transform_indices = @transform_1, window_bounds = array<i64: 32, 16>}, {pipeline_mode = #tpu.pipeline_mode<synchronous>, transform_indices = @transform_2, window_bounds = array<i64: 32, 1>}, {pipeline_mode = #tpu.pipeline_mode<synchronous>, transform_indices = @transform_3, window_bounds = array<i64: 32, 32>}, {pipeline_mode = #tpu.pipeline_mode<synchronous>, transform_indices = @transform_4, window_bounds = array<i64: 32, 1>}, {pipeline_mode = #tpu.pipeline_mode<synchronous>, transform_indices = @transform_5, window_bounds = array<i64: 8, 32>}, {pipeline_mode = #tpu.pipeline_mode<synchronous>, transform_indices = @transform_6, window_bounds = array<i64: 8, 1>}, {transform_indices = @transform_7, window_bounds = array<i64: 8, 128>}]} {
    %c0 = arith.constant 0 : index
    %c0_0 = arith.constant 0 : index
    %0 = vector.load %arg2[%c0, %c0_0] : memref<32x16xf32, #tpu.memory_space<vmem>>, vector<32x16xf32>
    %c0_1 = arith.constant 0 : index
    %c0_2 = arith.constant 0 : index
    %1 = vector.load %arg1[%c0_1, %c0_2] : memref<16x128xf32, #tpu.memory_space<vmem>>, vector<16x128xf32>
    %cst = arith.constant dense<0.000000e+00> : vector<32x128xf32>
    %2 = tpu.matmul %0, %1, %cst {dimension_numbers = #tpu.dot_dimension_numbers<[1], [0], [0], [1], [0, 0, 1, 1], [], []>} : vector<32x16xf32>, vector<16x128xf32>, vector<32x128xf32> -> vector<32x128xf32>
    %c0_3 = arith.constant 0 : index
    %c0_4 = arith.constant 0 : index
    %3 = vector.load %arg3[%c0_3, %c0_4] : memref<32x1xf32, #tpu.memory_space<vmem>>, vector<32x1xf32>
    %4 = vector.broadcast %3 : vector<32x1xf32> to vector<32x128xf32>
    %5 = arith.addf %2, %4 : vector<32x128xf32>
    %cst_5 = arith.constant 0.000000e+00 : f32
    %6 = vector.broadcast %cst_5 : f32 to vector<32x128xf32>
    %7 = arith.maximumf %5, %6 : vector<32x128xf32>
    %c0_6 = arith.constant 0 : index
    %c0_7 = arith.constant 0 : index
    %8 = vector.load %arg4[%c0_6, %c0_7] : memref<32x32xf32, #tpu.memory_space<vmem>>, vector<32x32xf32>
    %cst_8 = arith.constant dense<0.000000e+00> : vector<32x128xf32>
    %9 = tpu.matmul %8, %7, %cst_8 {dimension_numbers = #tpu.dot_dimension_numbers<[1], [0], [0], [1], [0, 0, 1, 1], [], []>} : vector<32x32xf32>, vector<32x128xf32>, vector<32x128xf32> -> vector<32x128xf32>
    %c0_9 = arith.constant 0 : index
    %c0_10 = arith.constant 0 : index
    %10 = vector.load %arg5[%c0_9, %c0_10] : memref<32x1xf32, #tpu.memory_space<vmem>>, vector<32x1xf32>
    %11 = vector.broadcast %10 : vector<32x1xf32> to vector<32x128xf32>
    %12 = arith.addf %9, %11 : vector<32x128xf32>
    %cst_11 = arith.constant 0.000000e+00 : f32
    %13 = vector.broadcast %cst_11 : f32 to vector<32x128xf32>
    %14 = arith.maximumf %12, %13 : vector<32x128xf32>
    %c0_12 = arith.constant 0 : index
    %c0_13 = arith.constant 0 : index
    %15 = vector.load %arg6[%c0_12, %c0_13] : memref<8x32xf32, #tpu.memory_space<vmem>>, vector<8x32xf32>
    %cst_14 = arith.constant dense<0.000000e+00> : vector<8x128xf32>
    %16 = tpu.matmul %15, %14, %cst_14 {dimension_numbers = #tpu.dot_dimension_numbers<[1], [0], [0], [1], [0, 0, 1, 1], [], []>} : vector<8x32xf32>, vector<32x128xf32>, vector<8x128xf32> -> vector<8x128xf32>
    %c0_15 = arith.constant 0 : index
    %c0_16 = arith.constant 0 : index
    %17 = vector.load %arg7[%c0_15, %c0_16] : memref<8x1xf32, #tpu.memory_space<vmem>>, vector<8x1xf32>
    %18 = vector.broadcast %17 : vector<8x1xf32> to vector<8x128xf32>
    %19 = arith.addf %16, %18 : vector<8x128xf32>
    %c0_17 = arith.constant 0 : index
    %c0_18 = arith.constant 0 : index
    %20 = vector.load %arg8[%c0_17, %c0_18] : memref<8x128xf32, #tpu.memory_space<vmem>>, vector<8x128xf32>
    tpu.vector_store %arg8[%c0_17, %c0_18], %19 {strides = array<i32>} : memref<8x128xf32, #tpu.memory_space<vmem>>, vector<8x128xf32>,
    return
  }
  func.func @transform_0(%arg0: i32) -> (i32, i32) {
    %c0_i32 = arith.constant 0 : i32
    %c0_i32_0 = arith.constant 0 : i32
    return %c0_i32, %arg0 : i32, i32
  }
  func.func @transform_1(%arg0: i32) -> (i32, i32) {
    %c0_i32 = arith.constant 0 : i32
    %c0_i32_0 = arith.constant 0 : i32
    %c0_i32_1 = arith.constant 0 : i32
    return %c0_i32, %c0_i32_0 : i32, i32
  }
  func.func @transform_2(%arg0: i32) -> (i32, i32) {
    %c0_i32 = arith.constant 0 : i32
    %c0_i32_0 = arith.constant 0 : i32
    %c0_i32_1 = arith.constant 0 : i32
    return %c0_i32, %c0_i32_0 : i32, i32
  }
  func.func @transform_3(%arg0: i32) -> (i32, i32) {
    %c0_i32 = arith.constant 0 : i32
    %c0_i32_0 = arith.constant 0 : i32
    %c0_i32_1 = arith.constant 0 : i32
    return %c0_i32, %c0_i32_0 : i32, i32
  }
  func.func @transform_4(%arg0: i32) -> (i32, i32) {
    %c0_i32 = arith.constant 0 : i32
    %c0_i32_0 = arith.constant 0 : i32
    %c0_i32_1 = arith.constant 0 : i32
    return %c0_i32, %c0_i32_0 : i32, i32
  }
  func.func @transform_5(%arg0: i32) -> (i32, i32) {
    %c0_i32 = arith.constant 0 : i32
    %c0_i32_0 = arith.constant 0 : i32
    %c0_i32_1 = arith.constant 0 : i32
    return %c0_i32, %c0_i32_0 : i32, i32
  }
  func.func @transform_6(%arg0: i32) -> (i32, i32) {
    %c0_i32 = arith.constant 0 : i32
    %c0_i32_0 = arith.constant 0 : i32
    %c0_i32_1 = arith.constant 0 : i32
    return %c0_i32, %c0_i32_0 : i32, i32
  }
  func.func @transform_7(%arg0: i32) -> (i32, i32) {
    %c0_i32 = arith.constant 0 : i32
    %c0_i32_0 = arith.constant 0 : i32
    return %c0_i32, %arg0 : i32, i32
  }
}

</mosaic_0001>

<llo_original>
// kernel: mlp_forward.1
$region0: #{mlp_forward.1}
  #allocation0 [shape = 'u32[]', space=smem, size = 0x4, offset = 0x4, fixed_abs, tag = 'smem constant byte address 0x4 - core index']
  #allocation1 [shape = 'u32[144,128]{1,0:T(1,128)}', space=vmem, size = 0x12000, scoped, tag = 'internal scratch']
  %s0 = inlined_call_operand.vmem [shape: f32[16,256], index: 0, kind: input, shape index: {}]
  %s1 = inlined_call_operand.vmem [shape: f32[32,16], index: 1, kind: input, shape index: {}]
  %s2 = inlined_call_operand.vmem [shape: f32[32,1], index: 2, kind: input, shape index: {}]
  %s3 = inlined_call_operand.vmem [shape: f32[32,32], index: 3, kind: input, shape index: {}]
  %s4 = inlined_call_operand.vmem [shape: f32[32,1], index: 4, kind: input, shape index: {}]
  %s5 = inlined_call_operand.vmem [shape: f32[8,32], index: 5, kind: input, shape index: {}]
  %s6 = inlined_call_operand.vmem [shape: f32[8,1], index: 6, kind: input, shape index: {}]
  %s7 = inlined_call_operand.vmem [shape: f32[8,256], index: 7, kind: output, shape index: {}]
  %s8 = sld [smem:[#allocation0]]
  $region99: #{mlp_forward.1} parent=0
    _
  %s10 = ssub.s32 1, %s8
  %s11 = scalar_select 0, %s10, %s8
  $region1: #{mlp_forward.1} parent=0
    #allocation2 [shape = 'u8[16384]{0}', space=vmem, size = 0x4000, scoped, tag = 'input window, operand 0']
    loop: start=0, step=1, limit=4
    $region2: #{mlp_forward.1} parent=1 // loop_pre_header
      _
    $region3: #{mlp_forward.1} parent=1 // loop_header
      %s13 = sphi 0, %s17
      %p14 = scmp.ge.s32.totalorder %s13, 4
      %s23 = sphi 0, %s25
      %s26 = sphi 0, %s23
      %s27 = sphi 0, %s26
      %s43 = sphi 0, %s27
      %s47 = sphi 0, %s47
      %s49 = sphi 0, %s47
      %s50 = sphi 0, %s49
      %s64 = sphi 0, %s50
      %s68 = sphi 0, %s68
      %s70 = sphi 0, %s68
      %s71 = sphi 0, %s70
      %s85 = sphi 0, %s71
      %s89 = sphi 0, %s89
      %s91 = sphi 0, %s89
      %s92 = sphi 0, %s91
      %s106 = sphi 0, %s92
      %s110 = sphi 0, %s110
      %s112 = sphi 0, %s110
      %s113 = sphi 0, %s112
      %s127 = sphi 0, %s113
      %s131 = sphi 0, %s131
      %s133 = sphi 0, %s131
      %s134 = sphi 0, %s133
      %s148 = sphi 0, %s134
      %s152 = sphi 0, %s152
      %s154 = sphi 0, %s152
      %s155 = sphi 0, %s154
      %s169 = sphi 0, %s155
      %s175 = sphi 0, %s177
      %s178 = sphi 0, %s175
      %s179 = sphi 0, %s178
      %s195 = sphi 0, %s179
    $region4: #{mlp_forward.1} parent=1 // loop_header_branch
      %16 = sbr.rel (%p14) target = $region8
    $region5: #{mlp_forward.1} parent=1 // loop_body
      %s18 = ssub.s32 %s13, 1
      %s19 = ssub.s32 %s13, 2
      %s20 = sadd.s32 %s13, 1
      %s21 = ssub.s32 %s13, %s20
      %p22 = scmp.eq.s32.totalorder %s21, 0
      %s24 = sadd.s32 %s23, 1
      %s25 = scalar_select %p22, %s23, %s24
      %p28 = pneg %p22
      %p29 = scmp.eq.s32.totalorder %s13, 1
      %p30 = por %p28, %p29
      %p31 = scmp.ne.s32.totalorder %s23, %s26
      %p32 = scmp.eq.s32.totalorder %s13, 0
      %p33 = por %p31, %p32
      %p34 = scmp.ne.s32.totalorder %s23, %s26
      %p35 = scmp.eq.s32.totalorder %s18, 1
      %p36 = por %p34, %p35
      %p37 = scmp.ne.s32.totalorder %s26, %s27
      %p38 = scmp.eq.s32.totalorder %s18, 0
      %p39 = por %p37, %p38
      %p40 = scmp.ne.s32.totalorder %s26, %s27
      %p41 = scmp.eq.s32.totalorder %s19, 1
      %p42 = por %p40, %p41
      %p44 = scmp.ne.s32.totalorder %s27, %s43
      %p45 = scmp.eq.s32.totalorder %s19, 0
      %p46 = por %p44, %p45
      %s48 = sadd.s32 %s47, 1
      %p51 = scmp.eq.s32.totalorder %s13, 1
      %p52 = scmp.ne.s32.totalorder %s47, %s49
      %p53 = scmp.eq.s32.totalorder %s13, 0
      %p54 = por %p52, %p53
      %p55 = scmp.ne.s32.totalorder %s47, %s49
      %p56 = scmp.eq.s32.totalorder %s18, 1
      %p57 = por %p55, %p56
      %p58 = scmp.ne.s32.totalorder %s49, %s50
      %p59 = scmp.eq.s32.totalorder %s18, 0
      %p60 = por %p58, %p59
      %p61 = scmp.ne.s32.totalorder %s49, %s50
      %p62 = scmp.eq.s32.totalorder %s19, 1
      %p63 = por %p61, %p62
      %p65 = scmp.ne.s32.totalorder %s50, %s64
      %p66 = scmp.eq.s32.totalorder %s19, 0
      %p67 = por %p65, %p66
      %s69 = sadd.s32 %s68, 1
      %p72 = scmp.eq.s32.totalorder %s13, 1
      %p73 = scmp.ne.s32.totalorder %s68, %s70
      %p74 = scmp.eq.s32.totalorder %s13, 0
      %p75 = por %p73, %p74
      %p76 = scmp.ne.s32.totalorder %s68, %s70
      %p77 = scmp.eq.s32.totalorder %s18, 1
      %p78 = por %p76, %p77
      %p79 = scmp.ne.s32.totalorder %s70, %s71
      %p80 = scmp.eq.s32.totalorder %s18, 0
      %p81 = por %p79, %p80
      %p82 = scmp.ne.s32.totalorder %s70, %s71
      %p83 = scmp.eq.s32.totalorder %s19, 1
      %p84 = por %p82, %p83
      %p86 = scmp.ne.s32.totalorder %s71, %s85
      %p87 = scmp.eq.s32.totalorder %s19, 0
      %p88 = por %p86, %p87
      %s90 = sadd.s32 %s89, 1
      %p93 = scmp.eq.s32.totalorder %s13, 1
      %p94 = scmp.ne.s32.totalorder %s89, %s91
      %p95 = scmp.eq.s32.totalorder %s13, 0
      %p96 = por %p94, %p95
      %p97 = scmp.ne.s32.totalorder %s89, %s91
      %p98 = scmp.eq.s32.totalorder %s18, 1
      %p99 = por %p97, %p98
      %p100 = scmp.ne.s32.totalorder %s91, %s92
      %p101 = scmp.eq.s32.totalorder %s18, 0
      %p102 = por %p100, %p101
      %p103 = scmp.ne.s32.totalorder %s91, %s92
      %p104 = scmp.eq.s32.totalorder %s19, 1
      %p105 = por %p103, %p104
      %p107 = scmp.ne.s32.totalorder %s92, %s106
      %p108 = scmp.eq.s32.totalorder %s19, 0
      %p109 = por %p107, %p108
      %s111 = sadd.s32 %s110, 1
      %p114 = scmp.eq.s32.totalorder %s13, 1
      %p115 = scmp.ne.s32.totalorder %s110, %s112
      %p116 = scmp.eq.s32.totalorder %s13, 0
      %p117 = por %p115, %p116
      %p118 = scmp.ne.s32.totalorder %s110, %s112
      %p119 = scmp.eq.s32.totalorder %s18, 1
      %p120 = por %p118, %p119
      %p121 = scmp.ne.s32.totalorder %s112, %s113
      %p122 = scmp.eq.s32.totalorder %s18, 0
      %p123 = por %p121, %p122
      %p124 = scmp.ne.s32.totalorder %s112, %s113
      %p125 = scmp.eq.s32.totalorder %s19, 1
      %p126 = por %p124, %p125
      %p128 = scmp.ne.s32.totalorder %s113, %s127
      %p129 = scmp.eq.s32.totalorder %s19, 0
      %p130 = por %p128, %p129
      %s132 = sadd.s32 %s131, 1
      %p135 = scmp.eq.s32.totalorder %s13, 1
      %p136 = scmp.ne.s32.totalorder %s131, %s133
      %p137 = scmp.eq.s32.totalorder %s13, 0
      %p138 = por %p136, %p137
      %p139 = scmp.ne.s32.totalorder %s131, %s133
      %p140 = scmp.eq.s32.totalorder %s18, 1
      %p141 = por %p139, %p140
      %p142 = scmp.ne.s32.totalorder %s133, %s134
      %p143 = scmp.eq.s32.totalorder %s18, 0
      %p144 = por %p142, %p143
      %p145 = scmp.ne.s32.totalorder %s133, %s134
      %p146 = scmp.eq.s32.totalorder %s19, 1
      %p147 = por %p145, %p146
      %p149 = scmp.ne.s32.totalorder %s134, %s148
      %p150 = scmp.eq.s32.totalorder %s19, 0
      %p151 = por %p149, %p150
      %s153 = sadd.s32 %s152, 1
      %p156 = scmp.eq.s32.totalorder %s13, 1
      %p157 = scmp.ne.s32.totalorder %s152, %s154
      %p158 = scmp.eq.s32.totalorder %s13, 0
      %p159 = por %p157, %p158
      %p160 = scmp.ne.s32.totalorder %s152, %s154
      %p161 = scmp.eq.s32.totalorder %s18, 1
      %p162 = por %p160, %p161
      %p163 = scmp.ne.s32.totalorder %s154, %s155
      %p164 = scmp.eq.s32.totalorder %s18, 0
      %p165 = por %p163, %p164
      %p166 = scmp.ne.s32.totalorder %s154, %s155
      %p167 = scmp.eq.s32.totalorder %s19, 1
      %p168 = por %p166, %p167
      %p170 = scmp.ne.s32.totalorder %s155, %s169
      %p171 = scmp.eq.s32.totalorder %s19, 0
      %p172 = por %p170, %p171
      %s173 = ssub.s32 %s13, %s20
      %p174 = scmp.eq.s32.totalorder %s173, 0
      %s176 = sadd.s32 %s175, 1
      %s177 = scalar_select %p174, %s175, %s176
      %p180 = pneg %p174
      %p181 = scmp.eq.s32.totalorder %s13, 1
      %p182 = por %p180, %p181
      %p183 = scmp.ne.s32.totalorder %s175, %s178
      %p184 = scmp.eq.s32.totalorder %s13, 0
      %p185 = por %p183, %p184
      %p186 = scmp.ne.s32.totalorder %s175, %s178
      %p187 = scmp.eq.s32.totalorder %s18, 1
      %p188 = por %p186, %p187
      %p189 = scmp.ne.s32.totalorder %s178, %s179
      %p190 = scmp.eq.s32.totalorder %s18, 0
      %p191 = por %p189, %p190
      %p192 = scmp.ne.s32.totalorder %s178, %s179
      %p193 = scmp.eq.s32.totalorder %s19, 1
      %p194 = por %p192, %p193
      %p196 = scmp.ne.s32.totalorder %s179, %s195
      %p197 = scmp.eq.s32.totalorder %s19, 0
      %p198 = por %p196, %p197
      %p199 = scmp.le.s32.totalorder 1, %s13
      %p200 = scmp.lt.s32.totalorder %s13, 3
      %p201 = pnand %p199, %p200
      %p202 = pneg %p201
      // Predicated region
      $region9: #{mlp_forward.1} parent=5 // pred_check
        _
      $region10: #{mlp_forward.1} parent=5 // pred_check_branch
        %204 = sbr.rel (%p201) target = $region12
      $region11: #{mlp_forward.1} parent=5 // pred_region
        %s205 = ssub.s32 %s13, 1
        // Predicated region
        $region13: #{mlp_forward.1} parent=11 // pred_check
          %p206 = pneg %p60
        $region14: #{mlp_forward.1} parent=11 // pred_check_branch
          %208 = sbr.rel (%p206) target = $region16
        $region15: #{mlp_forward.1} parent=11 // pred_region
          _
        $region16: #{mlp_forward.1} parent=11 // pred_fallthru
          _
        // Predicated region
        $region17: #{mlp_forward.1} parent=11 // pred_check
          %p209 = pneg %p81
        $region18: #{mlp_forward.1} parent=11 // pred_check_branch
          %211 = sbr.rel (%p209) target = $region20
        $region19: #{mlp_forward.1} parent=11 // pred_region
          _
        $region20: #{mlp_forward.1} parent=11 // pred_fallthru
          _
        // Predicated region
        $region21: #{mlp_forward.1} parent=11 // pred_check
          %p212 = pneg %p102
        $region22: #{mlp_forward.1} parent=11 // pred_check_branch
          %214 = sbr.rel (%p212) target = $region24
        $region23: #{mlp_forward.1} parent=11 // pred_region
          _
        $region24: #{mlp_forward.1} parent=11 // pred_fallthru
          _
        // Predicated region
        $region25: #{mlp_forward.1} parent=11 // pred_check
          %p215 = pneg %p123
        $region26: #{mlp_forward.1} parent=11 // pred_check_branch
          %217 = sbr.rel (%p215) target = $region28
        $region27: #{mlp_forward.1} parent=11 // pred_region
          _
        $region28: #{mlp_forward.1} parent=11 // pred_fallthru
          _
        // Predicated region
        $region29: #{mlp_forward.1} parent=11 // pred_check
          %p218 = pneg %p144
        $region30: #{mlp_forward.1} parent=11 // pred_check_branch
          %220 = sbr.rel (%p218) target = $region32
        $region31: #{mlp_forward.1} parent=11 // pred_region
          _
        $region32: #{mlp_forward.1} parent=11 // pred_fallthru
          _
        // Predicated region
        $region33: #{mlp_forward.1} parent=11 // pred_check
          %p221 = pneg %p165
        $region34: #{mlp_forward.1} parent=11 // pred_check_branch
          %223 = sbr.rel (%p221) target = $region36
        $region35: #{mlp_forward.1} parent=11 // pred_region
          _
        $region36: #{mlp_forward.1} parent=11 // pred_fallthru
          _
      $region12: #{mlp_forward.1} parent=5 // pred_fallthru
        _
      %p224 = scmp.lt.s32.totalorder %s13, 2
      // Predicated region
      $region37: #{mlp_forward.1} parent=5 // pred_check
        %p225 = pneg %p224
      $region38: #{mlp_forward.1} parent=5 // pred_check_branch
        %227 = sbr.rel (%p225) target = $region40
      $region39: #{mlp_forward.1} parent=5 // pred_region
        // Predicated region
        $region41: #{mlp_forward.1} parent=39 // pred_check
          %p228 = pneg %p33
        $region42: #{mlp_forward.1} parent=39 // pred_check_branch
          %230 = sbr.rel (%p228) target = $region44
        $region43: #{mlp_forward.1} parent=39 // pred_region
          %s231 = sand.u32 %s23, 1
          %s232 = sand.u32 %s23, 1
          %s233 = smul.addr %s232, 16
          %s234 = scalar_lea.vmem [#allocation2], %s233
          %s235 = smul.addr %s13, 8
          %s236 = scalar_lea.vmem %s0, %s235
          // Predicated region
          $region45: #{mlp_forward.1} parent=43 // pred_check
            _
          $region46: #{mlp_forward.1} parent=43 // pred_check_branch
            %238 = sbr.rel (0) target = $region48
          $region47: #{mlp_forward.1} parent=43 // pred_region
            // Predicated region
            $region49: #{mlp_forward.1} parent=47 // pred_check
              _
            $region50: #{mlp_forward.1} parent=47 // pred_check_branch
              %240 = sbr.rel (0) target = $region52
            $region51: #{mlp_forward.1} parent=47 // pred_region
              // Predicated region
              $region64: #{mlp_forward.1} parent=51 // pred_check
                _
              $region65: #{mlp_forward.1} parent=51 // pred_check_branch
                %257 = sbr.rel (0) target = $region67
              $region66: #{mlp_forward.1} parent=51 // pred_region
                loop: start=0, step=1, limit=1
                $region68: #{mlp_forward.1} parent=66 // loop_pre_header
                  _
                $region69: #{mlp_forward.1} parent=66 // loop_header
                  %s259 = sphi 0, %s263
                  %p260 = scmp.ge.s32.totalorder %s259, 1
                  %s264 = sphi %s236, %s236
                  %s265 = sphi %s234, %s234
                $region70: #{mlp_forward.1} parent=66 // loop_header_branch
                  %262 = sbr.rel (%p260) target = $region74
                $region71: #{mlp_forward.1} parent=66 // loop_body
                  %v266 = vld [vmem:[%s264] sm:$0xff]
                  %267 = vst [vmem:[%s265] sm:$0xff] %v266
                  %v268 = vld [vmem:[%s264 + $0x10] sm:$0xff]
                  %269 = vst [vmem:[%s265 + $0x8] sm:$0xff] %v268
                $region72: #{mlp_forward.1} parent=66 // loop_footer
                  %s263 = sadd.s32 1, %s259
                $region73: #{mlp_forward.1} parent=66 // loop_footer_branch
                  %258 = sbr.rel target = $region69
                $region74: #{mlp_forward.1} parent=66 // loop_exit
                  _
              $region67: #{mlp_forward.1} parent=51 // pred_fallthru
                _
              // Predicated region
              $region75: #{mlp_forward.1} parent=51 // pred_check
                _
              $region76: #{mlp_forward.1} parent=51 // pred_check_branch
                %271 = sbr.rel target = $region78
              $region77: #{mlp_forward.1} parent=51 // pred_region
                _
              $region78: #{mlp_forward.1} parent=51 // pred_fallthru
                _
            $region52: #{mlp_forward.1} parent=47 // pred_fallthru
              _
            // Predicated region
            $region53: #{mlp_forward.1} parent=47 // pred_check
              _
            $region54: #{mlp_forward.1} parent=47 // pred_check_branch
              %242 = sbr.rel target = $region56
            $region55: #{mlp_forward.1} parent=47 // pred_region
              loop: start=0, step=1, limit=1
              $region57: #{mlp_forward.1} parent=55 // loop_pre_header
                _
              $region58: #{mlp_forward.1} parent=55 // loop_header
                %s245 = sphi 0, %s249
                %p246 = scmp.ge.s32.totalorder %s245, 1
                %s250 = sphi %s236, %s236
                %s251 = sphi %s234, %s234
              $region59: #{mlp_forward.1} parent=55 // loop_header_branch
                %248 = sbr.rel (%p246) target = $region63
              $region60: #{mlp_forward.1} parent=55 // loop_body
                %v252 = vld [vmem:[%s250] sm:$0xff]
                %253 = vst [vmem:[%s251] sm:$0xff] %v252
                %v254 = vld [vmem:[%s250 + $0x10] sm:$0xff]
                %255 = vst [vmem:[%s251 + $0x8] sm:$0xff] %v254
              $region61: #{mlp_forward.1} parent=55 // loop_footer
                %s249 = sadd.s32 1, %s245
              $region62: #{mlp_forward.1} parent=55 // loop_footer_branch
                %244 = sbr.rel target = $region58
              $region63: #{mlp_forward.1} parent=55 // loop_exit
                _
            $region56: #{mlp_forward.1} parent=47 // pred_fallthru
              _
          $region48: #{mlp_forward.1} parent=43 // pred_fallthru
            _
          %272 = vnop
        $region44: #{mlp_forward.1} parent=39 // pred_fallthru
          _
      $region40: #{mlp_forward.1} parent=5 // pred_fallthru
        _
      %p273 = scmp.le.s32.totalorder 1, %s13
      %p274 = scmp.lt.s32.totalorder %s13, 3
      %p275 = pnand %p273, %p274
      %p276 = pneg %p275
      // Predicated region
      $region79: #{mlp_forward.1} parent=5 // pred_check
        _
      $region80: #{mlp_forward.1} parent=5 // pred_check_branch
        %278 = sbr.rel (%p275) target = $region82
      $region81: #{mlp_forward.1} parent=5 // pred_region
        %s279 = ssub.s32 %s13, 1
        %s280 = sand.u32 %s26, 1
        %s281 = sand.u32 %s26, 1
        %s282 = smul.addr %s281, 16
        %s283 = scalar_lea.vmem [#allocation2], %s282
        // Predicated region
        $region83: #{mlp_forward.1} parent=81 // pred_check
          %p284 = pneg %p39
        $region84: #{mlp_forward.1} parent=81 // pred_check_branch
          %286 = sbr.rel (%p284) target = $region86
        $region85: #{mlp_forward.1} parent=81 // pred_region
          _
        $region86: #{mlp_forward.1} parent=81 // pred_fallthru
          _
        %s287 = sand.u32 %s26, 1
        %s288 = sand.u32 %s26, 1
        %s289 = smul.addr %s288, 16
        %s290 = scalar_lea.vmem [#allocation2], %s289
        %p291 = pneg %p39
        %p292 = pneg %p36
        %p293 = pneg %p60
        %p294 = pneg %p57
        %p295 = pneg %p81
        %p296 = pneg %p78
        %p297 = pneg %p102
        %p298 = pneg %p99
        %p299 = pneg %p123
        %p300 = pneg %p120
        %p301 = pneg %p144
        %p302 = pneg %p141
        %p303 = pneg %p165
        %p304 = pneg %p162
        %p305 = pneg %p191
        %p306 = pneg %p188
        %p307 = scmp.lt.s32.totalorder %s18, 1
        %s308 = scalar_select %p307, %s18, 1
        %s309 = smul.addr %s308, 8
        %s310 = scalar_lea.vmem %s7, %s309
        %p311 = scmp.lt.s32.totalorder %s18, 1
        %s312 = scalar_select %p311, %s18, 1
        %s313 = smul.addr %s312, 8
        %s314 = scalar_lea.vmem %s7, %s313
        %v315 = vld [vmem:[%s1] sm:$0xff]
        %v316 = vld [vmem:[%s1 + $0x8] sm:$0xff]
        %v317 = vld [vmem:[%s1 + $0x10] sm:$0xff]
        %v318 = vld [vmem:[%s1 + $0x18] sm:$0xff]
        %v319 = vld [vmem:[%s283] sm:$0xff]
        %v320 = vld [vmem:[%s283 + $0x8] sm:$0xff]
        %v321 = vld [vmem:[%s2] sm:$0xff]
        %v322 = vld [vmem:[%s2 + $0x8] sm:$0xff]
        %v323 = vld [vmem:[%s2 + $0x10] sm:$0xff]
        %v324 = vld [vmem:[%s2 + $0x18] sm:$0xff]
        %326 = vset.pattern.permute.xlu0 0
        %327 = vperm.xlu0 %326, %v321
        %v328 = vpop.permute.xlu0 %327
        %331 = vset.pattern.permute.xlu0 0
        %332 = vperm.xlu0 %331, %v322
        %v333 = vpop.permute.xlu0 %332
        %336 = vset.pattern.permute.xlu0 0
        %337 = vperm.xlu0 %336, %v323
        %v338 = vpop.permute.xlu0 %337
        %341 = vset.pattern.permute.xlu0 0
        %342 = vperm.xlu0 %341, %v324
        %v343 = vpop.permute.xlu0 %342
        %vm345 = vcmask 130048
        %v347 = vsel %vm345, %v315, 0
        %v350 = vsel %vm345, %v316, 0
        %v353 = vsel %vm345, %v317, 0
        %v356 = vsel %vm345, %v318, 0
        %358 = vmatprep.subr.mxu0 0.0
        %359 = vmatpush1.msra.mxu0 %v319
        %360 = vmatprep.subr.mxu0 0.0
        %361 = vmatpush1.msra.mxu0 %v320
        %362 = vmatprep.subr.mxu0 0.0
        %363 = vmatpush1.msra.mxu0 0.0
        %364 = vmatprep.subr.mxu0 0.0
        %365 = vmatpush1.msra.mxu0 0.0
        %366 = vmatprep.subr.mxu0 0.0
        %367 = vmatpush1.msra.mxu0 0.0
        %368 = vmatprep.subr.mxu0 0.0
        %369 = vmatpush1.msra.mxu0 0.0
        %370 = vmatprep.subr.mxu0 0.0
        %371 = vmatpush1.msra.mxu0 0.0
        %372 = vmatprep.subr.mxu0 0.0
        %373 = vmatpush1.msra.mxu0 0.0
        %374 = vmatprep.subr.mxu0 0.0
        %375 = vmatpush1.msra.mxu0 0.0
        %376 = vmatprep.subr.mxu0 0.0
        %377 = vmatpush1.msra.mxu0 0.0
        %378 = vmatprep.subr.mxu0 0.0
        %379 = vmatpush1.msra.mxu0 0.0
        %380 = vmatprep.subr.mxu0 0.0
        %381 = vmatpush1.msra.mxu0 0.0
        %382 = vmatprep.subr.mxu0 0.0
        %383 = vmatpush1.msra.mxu0 0.0
        %384 = vmatprep.subr.mxu0 0.0
        %385 = vmatpush1.msra.mxu0 0.0
        %386 = vmatprep.subr.mxu0 0.0
        %387 = vmatpush1.msra.mxu0 0.0
        %388 = vmatprep.subr.mxu0 0.0
        %389 = vmatpush1.msra.mxu0 0.0
        %390 = vmatprep.subr.mxu0 0.0
        %391 = vmatpush1.msra.mxu0 0.0
        %392 = vmatprep.subr.mxu0 0.0
        %393 = vmatpush1.msra.mxu0 0.0
        %394 = vmatprep.subr.mxu0 0.0
        %395 = vmatpush1.msra.mxu0 0.0
        %396 = vmatprep.subr.mxu0 0.0
        %397 = vmatpush1.msra.mxu0 0.0
        %398 = vmatprep.subr.mxu0 0.0
        %399 = vmatpush1.msra.mxu0 0.0
        %400 = vmatprep.subr.mxu0 0.0
        %401 = vmatpush1.msra.mxu0 0.0
        %402 = vmatprep.subr.mxu0 0.0
        %403 = vmatpush1.msra.mxu0 0.0
        %404 = vmatprep.subr.mxu0 0.0
        %405 = vmatpush1.msra.mxu0 0.0
        %406 = vmatprep.subr.mxu0 0.0
        %407 = vmatpush1.msra.mxu0 0.0
        %408 = vmatprep.subr.mxu0 0.0
        %409 = vmatpush1.msra.mxu0 0.0
        %410 = vmatprep.subr.mxu0 0.0
        %411 = vmatpush1.msra.mxu0 0.0
        %412 = vmatprep.subr.mxu0 0.0
        %413 = vmatpush1.msra.mxu0 0.0
        %414 = vmatprep.subr.mxu0 0.0
        %415 = vmatpush1.msra.mxu0 0.0
        %416 = vmatprep.subr.mxu0 0.0
        %417 = vmatpush1.msra.mxu0 0.0
        %418 = vmatprep.subr.mxu0 0.0
        %419 = vmatpush1.msra.mxu0 0.0
        %420 = vmatprep.subr.mxu0 0.0
        %421 = vmatpush1.msra.mxu0 0.0
        %422 = vmatprep.mubr.f32.mxu0 0.0
        %423 = vmatmul.mubr.f32.gmra.mrb[0].mxu0 %v347
        %v424 = vpop.f32.mrb[0].mxu0
        %v425 = vadd.f32 %v328, %v424
        %v426 = vpop.f32.mrb[0].mxu0
        %427 = vmatprep.mubr.f32.mxu0 0.0
        %428 = vmatmul.mubr.f32.gmra.mrb[0].mxu0 %v350
        %v429 = vpop.f32.mrb[0].mxu0
        %v430 = vadd.f32 %v333, %v429
        %v431 = vpop.f32.mrb[0].mxu0
        %432 = vmatprep.mubr.f32.mxu0 0.0
        %433 = vmatmul.mubr.f32.gmra.mrb[0].mxu0 %v353
        %v434 = vpop.f32.mrb[0].mxu0
        %v435 = vadd.f32 %v338, %v434
        %v436 = vpop.f32.mrb[0].mxu0
        %437 = vmatprep.mubr.f32.mxu0 0.0
        %438 = vmatmul.mubr.f32.gmra.mrb[0].mxu0 %v356
        %v439 = vpop.f32.mrb[0].mxu0
        %v440 = vadd.f32 %v343, %v439
        %v441 = vpop.f32.mrb[0].mxu0
        %442 = vdwg.mxu0
        %v443 = vmax.f32 %v425, 0.0
        %v444 = vmax.f32 %v430, 0.0
        %v445 = vmax.f32 %v435, 0.0
        %v446 = vmax.f32 %v440, 0.0
        %v447 = vld [vmem:[%s3] sm:$0xff]
        %v448 = vld [vmem:[%s3 + $0x8] sm:$0xff]
        %v449 = vld [vmem:[%s3 + $0x10] sm:$0xff]
        %v450 = vld [vmem:[%s3 + $0x18] sm:$0xff]
        %v451 = vld [vmem:[%s4] sm:$0xff]
        %v452 = vld [vmem:[%s4 + $0x8] sm:$0xff]
        %v453 = vld [vmem:[%s4 + $0x10] sm:$0xff]
        %v454 = vld [vmem:[%s4 + $0x18] sm:$0xff]
        %456 = vset.pattern.permute.xlu0 0
        %457 = vperm.xlu0 %456, %v451
        %v458 = vpop.permute.xlu0 %457
        %461 = vset.pattern.permute.xlu0 0
        %462 = vperm.xlu0 %461, %v452
        %v463 = vpop.permute.xlu0 %462
        %466 = vset.pattern.permute.xlu0 0
        %467 = vperm.xlu0 %466, %v453
        %v468 = vpop.permute.xlu0 %467
        %471 = vset.pattern.permute.xlu0 0
        %472 = vperm.xlu0 %471, %v454
        %v473 = vpop.permute.xlu0 %472
        %vm475 = vcmask 261120
        %v477 = vsel %vm475, %v447, 0
        %v480 = vsel %vm475, %v448, 0
        %v483 = vsel %vm475, %v449, 0
        %v486 = vsel %vm475, %v450, 0
        %488 = vmatprep.subr.mxu0 0.0
        %489 = vmatpush1.msra.mxu0 %v443
        %490 = vmatprep.subr.mxu0 0.0
        %491 = vmatpush1.msra.mxu0 %v444
        %492 = vmatprep.subr.mxu0 0.0
        %493 = vmatpush1.msra.mxu0 %v445
        %494 = vmatprep.subr.mxu0 0.0
        %495 = vmatpush1.msra.mxu0 %v446
        %496 = vmatprep.subr.mxu0 0.0
        %497 = vmatpush1.msra.mxu0 0.0
        %498 = vmatprep.subr.mxu0 0.0
        %499 = vmatpush1.msra.mxu0 0.0
        %500 = vmatprep.subr.mxu0 0.0
        %501 = vmatpush1.msra.mxu0 0.0
        %502 = vmatprep.subr.mxu0 0.0
        %503 = vmatpush1.msra.mxu0 0.0
        %504 = vmatprep.subr.mxu0 0.0
        %505 = vmatpush1.msra.mxu0 0.0
        %506 = vmatprep.subr.mxu0 0.0
        %507 = vmatpush1.msra.mxu0 0.0
        %508 = vmatprep.subr.mxu0 0.0
        %509 = vmatpush1.msra.mxu0 0.0
        %510 = vmatprep.subr.mxu0 0.0
        %511 = vmatpush1.msra.mxu0 0.0
        %512 = vmatprep.subr.mxu0 0.0
        %513 = vmatpush1.msra.mxu0 0.0
        %514 = vmatprep.subr.mxu0 0.0
        %515 = vmatpush1.msra.mxu0 0.0
        %516 = vmatprep.subr.mxu0 0.0
        %517 = vmatpush1.msra.mxu0 0.0
        %518 = vmatprep.subr.mxu0 0.0
        %519 = vmatpush1.msra.mxu0 0.0
        %520 = vmatprep.subr.mxu0 0.0
        %521 = vmatpush1.msra.mxu0 0.0
        %522 = vmatprep.subr.mxu0 0.0
        %523 = vmatpush1.msra.mxu0 0.0
        %524 = vmatprep.subr.mxu0 0.0
        %525 = vmatpush1.msra.mxu0 0.0
        %526 = vmatprep.subr.mxu0 0.0
        %527 = vmatpush1.msra.mxu0 0.0
        %528 = vmatprep.subr.mxu0 0.0
        %529 = vmatpush1.msra.mxu0 0.0
        %530 = vmatprep.subr.mxu0 0.0
        %531 = vmatpush1.msra.mxu0 0.0
        %532 = vmatprep.subr.mxu0 0.0
        %533 = vmatpush1.msra.mxu0 0.0
        %534 = vmatprep.subr.mxu0 0.0
        %535 = vmatpush1.msra.mxu0 0.0
        %536 = vmatprep.subr.mxu0 0.0
        %537 = vmatpush1.msra.mxu0 0.0
        %538 = vmatprep.subr.mxu0 0.0
        %539 = vmatpush1.msra.mxu0 0.0
        %540 = vmatprep.subr.mxu0 0.0
        %541 = vmatpush1.msra.mxu0 0.0
        %542 = vmatprep.subr.mxu0 0.0
        %543 = vmatpush1.msra.mxu0 0.0
        %544 = vmatprep.subr.mxu0 0.0
        %545 = vmatpush1.msra.mxu0 0.0
        %546 = vmatprep.subr.mxu0 0.0
        %547 = vmatpush1.msra.mxu0 0.0
        %548 = vmatprep.subr.mxu0 0.0
        %549 = vmatpush1.msra.mxu0 0.0
        %550 = vmatprep.subr.mxu0 0.0
        %551 = vmatpush1.msra.mxu0 0.0
        %552 = vmatprep.mubr.f32.mxu0 0.0
        %553 = vmatmul.mubr.f32.gmra.mrb[0].mxu0 %v477
        %v554 = vpop.f32.mrb[0].mxu0
        %v555 = vadd.f32 %v458, %v554
        %v556 = vpop.f32.mrb[0].mxu0
        %557 = vmatprep.mubr.f32.mxu0 0.0
        %558 = vmatmul.mubr.f32.gmra.mrb[0].mxu0 %v480
        %v559 = vpop.f32.mrb[0].mxu0
        %v560 = vadd.f32 %v463, %v559
        %v561 = vpop.f32.mrb[0].mxu0
        %562 = vmatprep.mubr.f32.mxu0 0.0
        %563 = vmatmul.mubr.f32.gmra.mrb[0].mxu0 %v483
        %v564 = vpop.f32.mrb[0].mxu0
        %v565 = vadd.f32 %v468, %v564
        %v566 = vpop.f32.mrb[0].mxu0
        %567 = vmatprep.mubr.f32.mxu0 0.0
        %568 = vmatmul.mubr.f32.gmra.mrb[0].mxu0 %v486
        %v569 = vpop.f32.mrb[0].mxu0
        %v570 = vadd.f32 %v473, %v569
        %v571 = vpop.f32.mrb[0].mxu0
        %572 = vdwg.mxu0
        %v573 = vmax.f32 %v555, 0.0
        %v574 = vmax.f32 %v560, 0.0
        %v575 = vmax.f32 %v565, 0.0
        %v576 = vmax.f32 %v570, 0.0
        %v577 = vld [vmem:[%s5] sm:$0xff]
        %v578 = vld [vmem:[%s6] sm:$0xff]
        %580 = vset.pattern.permute.xlu0 0
        %581 = vperm.xlu0 %580, %v578
        %v582 = vpop.permute.xlu0 %581
        %v585 = vsel %vm475, %v577, 0
        %587 = vmatprep.subr.mxu0 0.0
        %588 = vmatpush1.msra.mxu0 %v573
        %589 = vmatprep.subr.mxu0 0.0
        %590 = vmatpush1.msra.mxu0 %v574
        %591 = vmatprep.subr.mxu0 0.0
        %592 = vmatpush1.msra.mxu0 %v575
        %593 = vmatprep.subr.mxu0 0.0
        %594 = vmatpush1.msra.mxu0 %v576
        %595 = vmatprep.subr.mxu0 0.0
        %596 = vmatpush1.msra.mxu0 0.0
        %597 = vmatprep.subr.mxu0 0.0
        %598 = vmatpush1.msra.mxu0 0.0
        %599 = vmatprep.subr.mxu0 0.0
        %600 = vmatpush1.msra.mxu0 0.0
        %601 = vmatprep.subr.mxu0 0.0
        %602 = vmatpush1.msra.mxu0 0.0
        %603 = vmatprep.subr.mxu0 0.0
        %604 = vmatpush1.msra.mxu0 0.0
        %605 = vmatprep.subr.mxu0 0.0
        %606 = vmatpush1.msra.mxu0 0.0
        %607 = vmatprep.subr.mxu0 0.0
        %608 = vmatpush1.msra.mxu0 0.0
        %609 = vmatprep.subr.mxu0 0.0
        %610 = vmatpush1.msra.mxu0 0.0
        %611 = vmatprep.subr.mxu0 0.0
        %612 = vmatpush1.msra.mxu0 0.0
        %613 = vmatprep.subr.mxu0 0.0
        %614 = vmatpush1.msra.mxu0 0.0
        %615 = vmatprep.subr.mxu0 0.0
        %616 = vmatpush1.msra.mxu0 0.0
        %617 = vmatprep.subr.mxu0 0.0
        %618 = vmatpush1.msra.mxu0 0.0
        %619 = vmatprep.subr.mxu0 0.0
        %620 = vmatpush1.msra.mxu0 0.0
        %621 = vmatprep.subr.mxu0 0.0
        %622 = vmatpush1.msra.mxu0 0.0
        %623 = vmatprep.subr.mxu0 0.0
        %624 = vmatpush1.msra.mxu0 0.0
        %625 = vmatprep.subr.mxu0 0.0
        %626 = vmatpush1.msra.mxu0 0.0
        %627 = vmatprep.subr.mxu0 0.0
        %628 = vmatpush1.msra.mxu0 0.0
        %629 = vmatprep.subr.mxu0 0.0
        %630 = vmatpush1.msra.mxu0 0.0
        %631 = vmatprep.subr.mxu0 0.0
        %632 = vmatpush1.msra.mxu0 0.0
        %633 = vmatprep.subr.mxu0 0.0
        %634 = vmatpush1.msra.mxu0 0.0
        %635 = vmatprep.subr.mxu0 0.0
        %636 = vmatpush1.msra.mxu0 0.0
        %637 = vmatprep.subr.mxu0 0.0
        %638 = vmatpush1.msra.mxu0 0.0
        %639 = vmatprep.subr.mxu0 0.0
        %640 = vmatpush1.msra.mxu0 0.0
        %641 = vmatprep.subr.mxu0 0.0
        %642 = vmatpush1.msra.mxu0 0.0
        %643 = vmatprep.subr.mxu0 0.0
        %644 = vmatpush1.msra.mxu0 0.0
        %645 = vmatprep.subr.mxu0 0.0
        %646 = vmatpush1.msra.mxu0 0.0
        %647 = vmatprep.subr.mxu0 0.0
        %648 = vmatpush1.msra.mxu0 0.0
        %649 = vmatprep.subr.mxu0 0.0
        %650 = vmatpush1.msra.mxu0 0.0
        %651 = vmatprep.mubr.f32.mxu0 0.0
        %652 = vmatmul.mubr.f32.gmra.mrb[0].mxu0 %v585
        %v653 = vpop.f32.mrb[0].mxu0
        %v654 = vadd.f32 %v582, %v653
        %v655 = vpop.f32.mrb[0].mxu0
        %656 = vdwg.mxu0
        %657 = vst [vmem:[%s314] sm:$0xff] %v654
        %p658 = scmp.lt.s32.totalorder %s18, 1
        %s659 = scalar_select %p658, %s18, 1
        %s660 = smul.addr %s659, 8
        %s661 = scalar_lea.vmem %s7, %s660
        // Predicated region
        $region87: #{mlp_forward.1} parent=81 // pred_check
          %p662 = pneg %p188
        $region88: #{mlp_forward.1} parent=81 // pred_check_branch
          %664 = sbr.rel (%p662) target = $region90
        $region89: #{mlp_forward.1} parent=81 // pred_region
          _
        $region90: #{mlp_forward.1} parent=81 // pred_fallthru
          _
      $region82: #{mlp_forward.1} parent=5 // pred_fallthru
        _
      %p665 = scmp.le.s32.totalorder 2, %s13
      // Predicated region
      $region91: #{mlp_forward.1} parent=5 // pred_check
        %p666 = pneg %p665
      $region92: #{mlp_forward.1} parent=5 // pred_check_branch
        %668 = sbr.rel (%p666) target = $region94
      $region93: #{mlp_forward.1} parent=5 // pred_region
        %s669 = ssub.s32 %s13, 2
        // Predicated region
        $region95: #{mlp_forward.1} parent=93 // pred_check
          %p670 = pneg %p194
        $region96: #{mlp_forward.1} parent=93 // pred_check_branch
          %672 = sbr.rel (%p670) target = $region98
        $region97: #{mlp_forward.1} parent=93 // pred_region
          %p673 = scmp.lt.s32.totalorder %s19, 1
          %s674 = scalar_select %p673, %s19, 1
          %s675 = smul.addr %s674, 8
          %s676 = scalar_lea.vmem %s7, %s675
        $region98: #{mlp_forward.1} parent=93 // pred_fallthru
          _
      $region94: #{mlp_forward.1} parent=5 // pred_fallthru
        _
    $region6: #{mlp_forward.1} parent=1 // loop_footer
      %s17 = sadd.s32 1, %s13
    $region7: #{mlp_forward.1} parent=1 // loop_footer_branch
      %12 = sbr.rel target = $region3
    $region8: #{mlp_forward.1} parent=1 // loop_exit
      _

</llo_original>
